<compile_context>
chip_gen: v7x
topology: tpu7x:2x2x1
jax: 0.10.0
libtpu: 0.0.40
codegen_flags: <defaults>
</compile_context>

<pallas_src>
import jax
import jax.numpy as jnp
from jax.experimental import pallas as pl
from jax.experimental.pallas import tpu as pltpu


def _round_up(n, m):
    return ((n + m - 1) // m) * m


def _dtypes():
    """(mxu_dtype, vpu_dtype).

    MXU operands: bf16 everywhere (f32 accumulate via preferred_element_type).
    VPU/EUP math: bf16 on v6e/v7x (bf16 VALU/EUP), f32 on v5e and unknown HW.
    """
    try:
        kind = jax.devices()[0].device_kind.lower()
    except Exception:
        return jnp.float32, jnp.float32
    if "v6" in kind or "v7" in kind:
        return jnp.bfloat16, jnp.bfloat16
    return jnp.bfloat16, jnp.float32


def policy_mu_kernel(xt_ref, w1_ref, b1_ref, w2_ref, b2_ref, w3_ref, b3_ref,
                     wmu_ref, bmu_ref, mu_ref):
    mxu_dt = w2_ref.dtype          # matmul operand dtype (bf16 on TPU)
    vpu_dt = b1_ref.dtype          # elementwise dtype (bf16 v6e/v7x, f32 v5e)

    # ---- fc1 on the MXU: (128,3) @ (3,TB), f32 accumulate ------------------
    h1 = jnp.dot(w1_ref[...], xt_ref[...].astype(mxu_dt),
                 preferred_element_type=jnp.float32)          # (128, TB) f32
    h1 = jnp.maximum(h1.astype(vpu_dt) + b1_ref[...], 0.0)    # bias + ReLU

    # ---- fc2 on the MXU: (64,128) @ (128,TB), f32 accumulate ---------------
    h2 = jnp.dot(w2_ref[...], h1.astype(mxu_dt),
                 preferred_element_type=jnp.float32)          # (64, TB) f32
    h2 = jnp.tanh(h2.astype(vpu_dt) + b2_ref[...])            # (64, TB)

    # ---- fc3 on the MXU: (32,64) @ (64,TB), f32 accumulate -----------------
    h3 = jnp.dot(w3_ref[...], h2.astype(mxu_dt),
                 preferred_element_type=jnp.float32)          # (32, TB) f32
    h3 = jnp.tanh(h3.astype(vpu_dt) + b3_ref[...])            # (32, TB)

    # ---- mu head (N=1, K=32): VPU multiply + f32 sublane reduction ---------
    mu = jnp.sum(wmu_ref[...] * h3, axis=0, keepdims=True,
                 dtype=jnp.float32)                           # (1, TB) f32
    mu_ref[...] = mu + bmu_ref[...]


def policy_forward(x, params, *, tb=4096, x_transposed=False):
    """Forward pass of Policy.

    x: (B, 3) float-ish, or (3, B) if x_transposed=True (skips the wrapper
       transpose copy -- preferred for large B when the producer can supply
       the transposed layout directly).
    params: PyTorch nn.Linear layout: W=(out,in), b stored as (out,1).
    Returns (mu (B,1) f32, log_std (1,1) f32, std (1,1) f32).
    """
    mxu_dt, vpu_dt = _dtypes()

    # Lane-dense: batch on the lane axis.
    if x_transposed:
        xt = x.astype(jnp.float32)                            # (3, B)
    else:
        xt = x.astype(jnp.float32).T                          # (3, B) one copy
    B = xt.shape[1]

    TB = min(tb, _round_up(B, 128))                           # lane-tile size
    B_pad = _round_up(B, TB)
    if B_pad != B:
        xt = jnp.pad(xt, ((0, 0), (0, B_pad - B)))
    grid = (B_pad // TB,)

    # Weights/biases: MXU operands in mxu_dt, elementwise operands in vpu_dt.
    w1 = params["w1"].astype(mxu_dt)                          # (128, 3)
    b1 = params["b1"].astype(vpu_dt)                          # (128, 1)
    w2 = params["w2"].astype(mxu_dt)                          # (64, 128)
    b2 = params["b2"].astype(vpu_dt)                          # (64, 1)
    w3 = params["w3"].astype(mxu_dt)                          # (32, 64)
    b3 = params["b3"].astype(vpu_dt)                          # (32, 1)
    wmu_t = params["wmu"].T.astype(vpu_dt)                    # (32, 1)
    bmu = params["bmu"].astype(jnp.float32)                   # (1, 1)

    def resident(a):  # whole-array block, constant across the batch grid
        return pl.BlockSpec(a.shape, lambda i: (0, 0))

    mu_t = pl.pallas_call(
        policy_mu_kernel,
        out_shape=jax.ShapeDtypeStruct((1, B_pad), jnp.float32),
        grid=grid,
        in_specs=[
            pl.BlockSpec((3, TB), lambda i: (0, i)),          # x batch tile
            resident(w1), resident(b1),
            resident(w2), resident(b2),
            resident(w3), resident(b3),
            resident(wmu_t), resident(bmu),
        ],
        out_specs=pl.BlockSpec((1, TB), lambda i: (0, i)),
        compiler_params=pltpu.CompilerParams(
            dimension_semantics=("parallel",)),
    )(xt, w1, b1, w2, b2, w3, b3, wmu_t, bmu)

    mu = mu_t[:, :B].T                                        # (B, 1)

    # x-independent head, hoisted out of the per-tile loop.
    log_std = 2.0 * jax.nn.sigmoid(params["log_std"])         # (1, 1)
    std = jnp.exp(log_std)
    return mu, log_std, std


def init_params(key):
    """Deterministic init; nn.Linear layout: W=(out,in), b stored as (out,1)."""
    ks = jax.random.split(key, 8)

    def linear(kw, kb, fan_in, fan_out):
        bound = 1.0 / (fan_in ** 0.5)
        w = jax.random.uniform(kw, (fan_out, fan_in), jnp.float32, -bound, bound)
        b = jax.random.uniform(kb, (fan_out, 1), jnp.float32, -bound, bound)
        return w, b

    w1, b1 = linear(ks[0], ks[1], 3, 128)
    w2, b2 = linear(ks[2], ks[3], 128, 64)
    w3, b3 = linear(ks[4], ks[5], 64, 32)
    wmu, bmu = linear(ks[6], ks[7], 32, 1)
    return {
        "w1": w1, "b1": b1,
        "w2": w2, "b2": b2,
        "w3": w3, "b3": b3,
        "wmu": wmu, "bmu": bmu,
        "log_std": jnp.zeros((1, 1), jnp.float32),  # nn.Parameter(torch.zeros(1,1))
    }


def policy_reference(x, p):
    h1 = jnp.maximum(x @ p["w1"].T + p["b1"].T, 0.0)
    h2 = jnp.tanh(h1 @ p["w2"].T + p["b2"].T)
    h3 = jnp.tanh(h2 @ p["w3"].T + p["b3"].T)
    mu = h3 @ p["wmu"].T + p["bmu"].T
    log_std = 2.0 * jax.nn.sigmoid(p["log_std"])
    return mu, log_std, jnp.exp(log_std)


if __name__ == "__main__":
    key = jax.random.PRNGKey(0)
    k_param, k_x = jax.random.split(key)
    params = init_params(k_param)

    mxu_dt, vpu_dt = _dtypes()
    # bf16 MXU operands / bf16 VPU math need a looser tolerance than pure f32.
    tol = 3e-2 if (mxu_dt == jnp.bfloat16 or vpu_dt == jnp.bfloat16) else 1e-5

    # Small single-tile case (B=8 pads to one 128-wide lane tile).
    B = 8
    x = jax.random.normal(k_x, (B, 3), jnp.float32)
    mu, log_std, std = policy_forward(x, params)
    jax.block_until_ready((mu, log_std, std))

    mu_ref, ls_ref, std_ref = policy_reference(x, params)
    assert mu.shape == (B, 1) and log_std.shape == (1, 1) and std.shape == (1, 1)
    assert jnp.allclose(mu, mu_ref, atol=tol, rtol=tol)
    assert jnp.allclose(log_std, ls_ref, atol=1e-6)
    assert jnp.allclose(std, std_ref, atol=1e-6)

    # Multi-step grid case (exercises tiling + padding + batch slicing).
    B2 = 384
    x2 = jax.random.normal(jax.random.PRNGKey(1), (B2, 3), jnp.float32)
    mu2, _, _ = policy_forward(x2, params, tb=256)
    jax.block_until_ready(mu2)
    mu2_ref, _, _ = policy_reference(x2, params)
    assert mu2.shape == (B2, 1)
    assert jnp.allclose(mu2, mu2_ref, atol=tol, rtol=tol)

    print("KERNEL_OK")
</pallas_src>

<mosaic_0001>
module attributes {stable_mosaic.version = 11 : i64} {
  func.func @policy_mu_kernel(%arg0: i32, %arg1: memref<3x128xf32, #tpu.memory_space<vmem>>, %arg2: memref<128x3xbf16, #tpu.memory_space<vmem>>, %arg3: memref<128x1xf32, #tpu.memory_space<vmem>>, %arg4: memref<64x128xbf16, #tpu.memory_space<vmem>>, %arg5: memref<64x1xf32, #tpu.memory_space<vmem>>, %arg6: memref<32x64xbf16, #tpu.memory_space<vmem>>, %arg7: memref<32x1xf32, #tpu.memory_space<vmem>>, %arg8: memref<32x1xf32, #tpu.memory_space<vmem>>, %arg9: memref<1x1xf32, #tpu.memory_space<vmem>>, %arg10: memref<1x128xf32, #tpu.memory_space<vmem>>) attributes {dimension_semantics = [#tpu.dimension_semantics<parallel>], iteration_bounds = array<i64: 1>, scalar_prefetch = 0 : i64, scratch_operands = 0 : i64, tpu.core_type = #tpu.core_type<tc>, window_params = [{transform_indices = @transform_0, window_bounds = array<i64: 3, 128>}, {pipeline_mode = #tpu.pipeline_mode<synchronous>, transform_indices = @transform_1, window_bounds = array<i64: 128, 3>}, {pipeline_mode = #tpu.pipeline_mode<synchronous>, transform_indices = @transform_2, window_bounds = array<i64: 128, 1>}, {pipeline_mode = #tpu.pipeline_mode<synchronous>, transform_indices = @transform_3, window_bounds = array<i64: 64, 128>}, {pipeline_mode = #tpu.pipeline_mode<synchronous>, transform_indices = @transform_4, window_bounds = array<i64: 64, 1>}, {pipeline_mode = #tpu.pipeline_mode<synchronous>, transform_indices = @transform_5, window_bounds = array<i64: 32, 64>}, {pipeline_mode = #tpu.pipeline_mode<synchronous>, transform_indices = @transform_6, window_bounds = array<i64: 32, 1>}, {pipeline_mode = #tpu.pipeline_mode<synchronous>, transform_indices = @transform_7, window_bounds = array<i64: 32, 1>}, {pipeline_mode = #tpu.pipeline_mode<synchronous>, transform_indices = @transform_8, window_bounds = array<i64: 1, 1>}, {transform_indices = @transform_9, window_bounds = array<i64: 1, 128>}]} {
    %c0 = arith.constant 0 : index
    %c0_0 = arith.constant 0 : index
    %0 = vector.load %arg2[%c0, %c0_0] : memref<128x3xbf16, #tpu.memory_space<vmem>>, vector<128x3xbf16>
    %c0_1 = arith.constant 0 : index
    %c0_2 = arith.constant 0 : index
    %1 = vector.load %arg1[%c0_1, %c0_2] : memref<3x128xf32, #tpu.memory_space<vmem>>, vector<3x128xf32>
    %2 = arith.truncf %1 : vector<3x128xf32> to vector<3x128xbf16>
    %cst = arith.constant dense<0.000000e+00> : vector<128x128xf32>
    %3 = tpu.matmul %0, %2, %cst {dimension_numbers = #tpu.dot_dimension_numbers<[1], [0], [0], [1], [0, 0, 1, 1], [], []>} : vector<128x3xbf16>, vector<3x128xbf16>, vector<128x128xf32> -> vector<128x128xf32>
    %c0_3 = arith.constant 0 : index
    %c0_4 = arith.constant 0 : index
    %4 = vector.load %arg3[%c0_3, %c0_4] : memref<128x1xf32, #tpu.memory_space<vmem>>, vector<128x1xf32>
    %5 = vector.broadcast %4 : vector<128x1xf32> to vector<128x128xf32>
    %6 = arith.addf %3, %5 : vector<128x128xf32>
    %cst_5 = arith.constant 0.000000e+00 : f32
    %7 = vector.broadcast %cst_5 : f32 to vector<128x128xf32>
    %8 = arith.maximumf %6, %7 : vector<128x128xf32>
    %c0_6 = arith.constant 0 : index
    %c0_7 = arith.constant 0 : index
    %9 = vector.load %arg4[%c0_6, %c0_7] : memref<64x128xbf16, #tpu.memory_space<vmem>>, vector<64x128xbf16>
    %10 = arith.truncf %8 : vector<128x128xf32> to vector<128x128xbf16>
    %cst_8 = arith.constant dense<0.000000e+00> : vector<64x128xf32>
    %11 = tpu.matmul %9, %10, %cst_8 {dimension_numbers = #tpu.dot_dimension_numbers<[1], [0], [0], [1], [0, 0, 1, 1], [], []>} : vector<64x128xbf16>, vector<128x128xbf16>, vector<64x128xf32> -> vector<64x128xf32>
    %c0_9 = arith.constant 0 : index
    %c0_10 = arith.constant 0 : index
    %12 = vector.load %arg5[%c0_9, %c0_10] : memref<64x1xf32, #tpu.memory_space<vmem>>, vector<64x1xf32>
    %13 = vector.broadcast %12 : vector<64x1xf32> to vector<64x128xf32>
    %14 = arith.addf %11, %13 : vector<64x128xf32>
    %15 = math.tanh %14 : vector<64x128xf32>
    %c0_11 = arith.constant 0 : index
    %c0_12 = arith.constant 0 : index
    %16 = vector.load %arg6[%c0_11, %c0_12] : memref<32x64xbf16, #tpu.memory_space<vmem>>, vector<32x64xbf16>
    %17 = arith.truncf %15 : vector<64x128xf32> to vector<64x128xbf16>
    %cst_13 = arith.constant dense<0.000000e+00> : vector<32x128xf32>
    %18 = tpu.matmul %16, %17, %cst_13 {dimension_numbers = #tpu.dot_dimension_numbers<[1], [0], [0], [1], [0, 0, 1, 1], [], []>} : vector<32x64xbf16>, vector<64x128xbf16>, vector<32x128xf32> -> vector<32x128xf32>
    %c0_14 = arith.constant 0 : index
    %c0_15 = arith.constant 0 : index
    %19 = vector.load %arg7[%c0_14, %c0_15] : memref<32x1xf32, #tpu.memory_space<vmem>>, vector<32x1xf32>
    %20 = vector.broadcast %19 : vector<32x1xf32> to vector<32x128xf32>
    %21 = arith.addf %18, %20 : vector<32x128xf32>
    %22 = math.tanh %21 : vector<32x128xf32>
    %c0_16 = arith.constant 0 : index
    %c0_17 = arith.constant 0 : index
    %23 = vector.load %arg8[%c0_16, %c0_17] : memref<32x1xf32, #tpu.memory_space<vmem>>, vector<32x1xf32>
    %24 = vector.broadcast %23 : vector<32x1xf32> to vector<32x128xf32>
    %25 = arith.mulf %24, %22 : vector<32x128xf32>
    %cst_18 = arith.constant dense<0.000000e+00> : vector<128xf32>
    %26 = vector.multi_reduction <add>, %25, %cst_18 [0] : vector<32x128xf32> to vector<128xf32>
    %27 = vector.shape_cast %26 : vector<128xf32> to vector<1x128xf32>
    %c0_19 = arith.constant 0 : index
    %c0_20 = arith.constant 0 : index
    %28 = vector.load %arg9[%c0_19, %c0_20] : memref<1x1xf32, #tpu.memory_space<vmem>>, vector<1x1xf32>
    %29 = vector.broadcast %28 : vector<1x1xf32> to vector<1x128xf32>
    %30 = arith.addf %27, %29 : vector<1x128xf32>
    %c0_21 = arith.constant 0 : index
    %c0_22 = arith.constant 0 : index
    %31 = vector.load %arg10[%c0_21, %c0_22] : memref<1x128xf32, #tpu.memory_space<vmem>>, vector<1x128xf32>
    tpu.vector_store %arg10[%c0_21, %c0_22], %30 {strides = array<i32>} : memref<1x128xf32, #tpu.memory_space<vmem>>, vector<1x128xf32>,
    return
  }
  func.func @transform_0(%arg0: i32) -> (i32, i32) {
    %c0_i32 = arith.constant 0 : i32
    %c0_i32_0 = arith.constant 0 : i32
    return %c0_i32, %arg0 : i32, i32
  }
  func.func @transform_1(%arg0: i32) -> (i32, i32) {
    %c0_i32 = arith.constant 0 : i32
    %c0_i32_0 = arith.constant 0 : i32
    %c0_i32_1 = arith.constant 0 : i32
    return %c0_i32, %c0_i32_0 : i32, i32
  }
  func.func @transform_2(%arg0: i32) -> (i32, i32) {
    %c0_i32 = arith.constant 0 : i32
    %c0_i32_0 = arith.constant 0 : i32
    %c0_i32_1 = arith.constant 0 : i32
    return %c0_i32, %c0_i32_0 : i32, i32
  }
  func.func @transform_3(%arg0: i32) -> (i32, i32) {
    %c0_i32 = arith.constant 0 : i32
    %c0_i32_0 = arith.constant 0 : i32
    %c0_i32_1 = arith.constant 0 : i32
    return %c0_i32, %c0_i32_0 : i32, i32
  }
  func.func @transform_4(%arg0: i32) -> (i32, i32) {
    %c0_i32 = arith.constant 0 : i32
    %c0_i32_0 = arith.constant 0 : i32
    %c0_i32_1 = arith.constant 0 : i32
    return %c0_i32, %c0_i32_0 : i32, i32
  }
  func.func @transform_5(%arg0: i32) -> (i32, i32) {
    %c0_i32 = arith.constant 0 : i32
    %c0_i32_0 = arith.constant 0 : i32
    %c0_i32_1 = arith.constant 0 : i32
    return %c0_i32, %c0_i32_0 : i32, i32
  }
  func.func @transform_6(%arg0: i32) -> (i32, i32) {
    %c0_i32 = arith.constant 0 : i32
    %c0_i32_0 = arith.constant 0 : i32
    %c0_i32_1 = arith.constant 0 : i32
    return %c0_i32, %c0_i32_0 : i32, i32
  }
  func.func @transform_7(%arg0: i32) -> (i32, i32) {
    %c0_i32 = arith.constant 0 : i32
    %c0_i32_0 = arith.constant 0 : i32
    %c0_i32_1 = arith.constant 0 : i32
    return %c0_i32, %c0_i32_0 : i32, i32
  }
  func.func @transform_8(%arg0: i32) -> (i32, i32) {
    %c0_i32 = arith.constant 0 : i32
    %c0_i32_0 = arith.constant 0 : i32
    %c0_i32_1 = arith.constant 0 : i32
    return %c0_i32, %c0_i32_0 : i32, i32
  }
  func.func @transform_9(%arg0: i32) -> (i32, i32) {
    %c0_i32 = arith.constant 0 : i32
    %c0_i32_0 = arith.constant 0 : i32
    return %c0_i32, %arg0 : i32, i32
  }
}

</mosaic_0001>

<llo_original>
// kernel: tpu_custom_call.1
$region0: #{tpu_custom_call.1}
  #allocation0 [shape = 'u32[]', space=smem, size = 0x4, offset = 0x4, fixed_abs, tag = 'smem constant byte address 0x4 - core index']
  #allocation1 [shape = 'u32[144,128]{1,0:T(1,128)}', space=vmem, size = 0x12000, scoped, tag = 'internal scratch']
  #allocation2 [shape = 'f32[1,1]{1,0:T(1,128)S(1)}', space=vmem, size = 0x200, scoped, tag = 'scoped memory for tpu_custom_call.1']
  %s0 = inlined_call_operand.vmem [shape: f32[3,128], index: 0, kind: input, shape index: {}]
  %s1 = inlined_call_operand.vmem [shape: bf16[128,3], index: 1, kind: input, shape index: {}]
  %s2 = inlined_call_operand.vmem [shape: f32[128,1], index: 2, kind: input, shape index: {}]
  %s3 = inlined_call_operand.vmem [shape: bf16[64,128], index: 3, kind: input, shape index: {}]
  %s4 = inlined_call_operand.vmem [shape: f32[64,1], index: 4, kind: input, shape index: {}]
  %s5 = inlined_call_operand.vmem [shape: bf16[32,64], index: 5, kind: input, shape index: {}]
  %s6 = inlined_call_operand.vmem [shape: f32[32,1], index: 6, kind: input, shape index: {}]
  %s7 = inlined_call_operand.vmem [shape: f32[32,1], index: 7, kind: input, shape index: {}]
  %s8 = inlined_call_operand.<no memory space> [shape: f32[1,1], index: 8, kind: input, shape index: {}]
  %s9 = inlined_call_operand.hbm [shape: f32[1,128], index: 9, kind: output, shape index: {}]
  %s10 = sld [smem:[#allocation0]]
  $region46: #{tpu_custom_call.1} parent=0
    _
  %s12 = ssub.s32 1, %s10
  %s13 = scalar_select 0, %s12, %s10
  %v14 = vstv %s8
  %15 = vst [vmem:[#allocation2] sm:$0x1] %v14
  $region1: #{tpu_custom_call.1} parent=0
    #allocation3 [shape = 'u8[512]{0}', space=vmem, size = 0x400, scoped, tag = 'output window, operand 0, single buffered']
    #allocation4 [shape = 's32[1]{0}', space=sflag, size = 0x4, scoped, tag = 'scoped memory for tpu_custom_call.1']
    %16 = vsyncpa [#allocation4], 0
    // Predicated region
    $region2: #{tpu_custom_call.1} parent=1 // pred_check
      _
    $region3: #{tpu_custom_call.1} parent=1 // pred_check_branch
      %18 = sbr.rel (0) target = $region5
    $region4: #{tpu_custom_call.1} parent=1 // pred_region
      _
    $region5: #{tpu_custom_call.1} parent=1 // pred_fallthru
      _
    // Predicated region
    $region6: #{tpu_custom_call.1} parent=1 // pred_check
      _
    $region7: #{tpu_custom_call.1} parent=1 // pred_check_branch
      %20 = sbr.rel (0) target = $region9
    $region8: #{tpu_custom_call.1} parent=1 // pred_region
      _
    $region9: #{tpu_custom_call.1} parent=1 // pred_fallthru
      _
    // Predicated region
    $region10: #{tpu_custom_call.1} parent=1 // pred_check
      _
    $region11: #{tpu_custom_call.1} parent=1 // pred_check_branch
      %22 = sbr.rel (0) target = $region13
    $region12: #{tpu_custom_call.1} parent=1 // pred_region
      _
    $region13: #{tpu_custom_call.1} parent=1 // pred_fallthru
      _
    // Predicated region
    $region14: #{tpu_custom_call.1} parent=1 // pred_check
      _
    $region15: #{tpu_custom_call.1} parent=1 // pred_check_branch
      %24 = sbr.rel (0) target = $region17
    $region16: #{tpu_custom_call.1} parent=1 // pred_region
      _
    $region17: #{tpu_custom_call.1} parent=1 // pred_fallthru
      _
    // Predicated region
    $region18: #{tpu_custom_call.1} parent=1 // pred_check
      _
    $region19: #{tpu_custom_call.1} parent=1 // pred_check_branch
      %26 = sbr.rel (0) target = $region21
    $region20: #{tpu_custom_call.1} parent=1 // pred_region
      _
    $region21: #{tpu_custom_call.1} parent=1 // pred_fallthru
      _
    // Predicated region
    $region22: #{tpu_custom_call.1} parent=1 // pred_check
      _
    $region23: #{tpu_custom_call.1} parent=1 // pred_check_branch
      %28 = sbr.rel (0) target = $region25
    $region24: #{tpu_custom_call.1} parent=1 // pred_region
      _
    $region25: #{tpu_custom_call.1} parent=1 // pred_fallthru
      _
    // Predicated region
    $region26: #{tpu_custom_call.1} parent=1 // pred_check
      _
    $region27: #{tpu_custom_call.1} parent=1 // pred_check_branch
      %30 = sbr.rel (0) target = $region29
    $region28: #{tpu_custom_call.1} parent=1 // pred_region
      _
    $region29: #{tpu_custom_call.1} parent=1 // pred_fallthru
      _
    // Predicated region
    $region30: #{tpu_custom_call.1} parent=1 // pred_check
      _
    $region31: #{tpu_custom_call.1} parent=1 // pred_check_branch
      %32 = sbr.rel (0) target = $region33
    $region32: #{tpu_custom_call.1} parent=1 // pred_region
      _
    $region33: #{tpu_custom_call.1} parent=1 // pred_fallthru
      _
    // Predicated region
    $region34: #{tpu_custom_call.1} parent=1 // pred_check
      _
    $region35: #{tpu_custom_call.1} parent=1 // pred_check_branch
      %34 = sbr.rel (0) target = $region37
    $region36: #{tpu_custom_call.1} parent=1 // pred_region
      _
    $region37: #{tpu_custom_call.1} parent=1 // pred_fallthru
      _
    %v36 = vld [vmem:[%s1] sm:$0xf]
    %v37 = vld [vmem:[%s1 + $0x4] sm:$0xf]
    %v38 = vld [vmem:[%s1 + $0x8] sm:$0xf]
    %v39 = vld [vmem:[%s1 + $0xc] sm:$0xf]
    %v40 = vld [vmem:[%s1 + $0x10] sm:$0xf]
    %v41 = vld [vmem:[%s1 + $0x14] sm:$0xf]
    %v42 = vld [vmem:[%s1 + $0x18] sm:$0xf]
    %v43 = vld [vmem:[%s1 + $0x1c] sm:$0xf]
    %v44 = vld [vmem:[%s1 + $0x20] sm:$0xf]
    %v45 = vld [vmem:[%s1 + $0x24] sm:$0xf]
    %v46 = vld [vmem:[%s1 + $0x28] sm:$0xf]
    %v47 = vld [vmem:[%s1 + $0x2c] sm:$0xf]
    %v48 = vld [vmem:[%s1 + $0x30] sm:$0xf]
    %v49 = vld [vmem:[%s1 + $0x34] sm:$0xf]
    %v50 = vld [vmem:[%s1 + $0x38] sm:$0xf]
    %v51 = vld [vmem:[%s1 + $0x3c] sm:$0xf]
    %v52 = vld [vmem:[%s0] sm:$0x7]
    %v53 = vpack.c.bf16 %v52, %v52
    %v54 = vld [vmem:[%s2] sm:$0xff]
    %v55 = vld [vmem:[%s2 + $0x8] sm:$0xff]
    %v56 = vld [vmem:[%s2 + $0x10] sm:$0xff]
    %v57 = vld [vmem:[%s2 + $0x18] sm:$0xff]
    %v58 = vld [vmem:[%s2 + $0x20] sm:$0xff]
    %v59 = vld [vmem:[%s2 + $0x28] sm:$0xff]
    %v60 = vld [vmem:[%s2 + $0x30] sm:$0xff]
    %v61 = vld [vmem:[%s2 + $0x38] sm:$0xff]
    %v62 = vld [vmem:[%s2 + $0x40] sm:$0xff]
    %v63 = vld [vmem:[%s2 + $0x48] sm:$0xff]
    %v64 = vld [vmem:[%s2 + $0x50] sm:$0xff]
    %v65 = vld [vmem:[%s2 + $0x58] sm:$0xff]
    %v66 = vld [vmem:[%s2 + $0x60] sm:$0xff]
    %v67 = vld [vmem:[%s2 + $0x68] sm:$0xff]
    %v68 = vld [vmem:[%s2 + $0x70] sm:$0xff]
    %v69 = vld [vmem:[%s2 + $0x78] sm:$0xff]
    %71 = vset.pattern.permute.xlu0 0
    %72 = vperm.xlu0 %71, %v54
    %v73 = vpop.permute.xlu0 %72
    %76 = vset.pattern.permute.xlu0 0
    %77 = vperm.xlu0 %76, %v55
    %v78 = vpop.permute.xlu0 %77
    %81 = vset.pattern.permute.xlu0 0
    %82 = vperm.xlu0 %81, %v56
    %v83 = vpop.permute.xlu0 %82
    %86 = vset.pattern.permute.xlu0 0
    %87 = vperm.xlu0 %86, %v57
    %v88 = vpop.permute.xlu0 %87
    %91 = vset.pattern.permute.xlu0 0
    %92 = vperm.xlu0 %91, %v58
    %v93 = vpop.permute.xlu0 %92
    %96 = vset.pattern.permute.xlu0 0
    %97 = vperm.xlu0 %96, %v59
    %v98 = vpop.permute.xlu0 %97
    %101 = vset.pattern.permute.xlu0 0
    %102 = vperm.xlu0 %101, %v60
    %v103 = vpop.permute.xlu0 %102
    %106 = vset.pattern.permute.xlu0 0
    %107 = vperm.xlu0 %106, %v61
    %v108 = vpop.permute.xlu0 %107
    %111 = vset.pattern.permute.xlu0 0
    %112 = vperm.xlu0 %111, %v62
    %v113 = vpop.permute.xlu0 %112
    %116 = vset.pattern.permute.xlu0 0
    %117 = vperm.xlu0 %116, %v63
    %v118 = vpop.permute.xlu0 %117
    %121 = vset.pattern.permute.xlu0 0
    %122 = vperm.xlu0 %121, %v64
    %v123 = vpop.permute.xlu0 %122
    %126 = vset.pattern.permute.xlu0 0
    %127 = vperm.xlu0 %126, %v65
    %v128 = vpop.permute.xlu0 %127
    %131 = vset.pattern.permute.xlu0 0
    %132 = vperm.xlu0 %131, %v66
    %v133 = vpop.permute.xlu0 %132
    %136 = vset.pattern.permute.xlu0 0
    %137 = vperm.xlu0 %136, %v67
    %v138 = vpop.permute.xlu0 %137
    %141 = vset.pattern.permute.xlu0 0
    %142 = vperm.xlu0 %141, %v68
    %v143 = vpop.permute.xlu0 %142
    %146 = vset.pattern.permute.xlu0 0
    %147 = vperm.xlu0 %146, %v69
    %v148 = vpop.permute.xlu0 %147
    %v166 = vunpack.c.l.b16 %v36
    %v167 = vunpack.c.l.b16 %v37
    %v168 = vunpack.c.l.b16 %v38
    %v169 = vunpack.c.l.b16 %v39
    %v170 = vunpack.c.l.b16 %v40
    %v171 = vunpack.c.l.b16 %v41
    %v172 = vunpack.c.l.b16 %v42
    %v173 = vunpack.c.l.b16 %v43
    %v174 = vunpack.c.l.b16 %v44
    %v175 = vunpack.c.l.b16 %v45
    %v176 = vunpack.c.l.b16 %v46
    %v177 = vunpack.c.l.b16 %v47
    %v178 = vunpack.c.l.b16 %v48
    %v179 = vunpack.c.l.b16 %v49
    %v180 = vunpack.c.l.b16 %v50
    %v181 = vunpack.c.l.b16 %v51
    %v182 = vpack.c.b16 %v167, %v166
    %v183 = vpack.c.b16 %v169, %v168
    %v184 = vpack.c.b16 %v171, %v170
    %v185 = vpack.c.b16 %v173, %v172
    %v186 = vpack.c.b16 %v175, %v174
    %v187 = vpack.c.b16 %v177, %v176
    %v188 = vpack.c.b16 %v179, %v178
    %v189 = vpack.c.b16 %v181, %v180
    %vm190 = vcmask 23552
    %v192 = vsel %vm190, %v182, 0
    %v195 = vsel %vm190, %v183, 0
    %v198 = vsel %vm190, %v184, 0
    %v201 = vsel %vm190, %v185, 0
    %v204 = vsel %vm190, %v186, 0
    %v207 = vsel %vm190, %v187, 0
    %v210 = vsel %vm190, %v188, 0
    %v213 = vsel %vm190, %v189, 0
    %vm215 = vcmask 1040384
    %vm216 = vcmask 1041408
    %v217 = vsel %vm215, 4294967295, 65535
    %v218 = vsel %vm216, %v217, 0
    %v220 = vand.u32 %v53, %v218
    %222 = vmatprep.subr.bf16.mxu0 0
    %223 = vmatpush1.bf16.msra.mxu0 %v220
    %224 = vmatprep.subr.bf16.mxu0 0
    %225 = vmatpush1.bf16.msra.mxu0 0
    %226 = vmatprep.subr.bf16.mxu0 0
    %227 = vmatpush1.bf16.msra.mxu0 0
    %228 = vmatprep.subr.bf16.mxu0 0
    %229 = vmatpush1.bf16.msra.mxu0 0
    %230 = vmatprep.subr.bf16.mxu0 0
    %231 = vmatpush1.bf16.msra.mxu0 0
    %232 = vmatprep.subr.bf16.mxu0 0
    %233 = vmatpush1.bf16.msra.mxu0 0
    %234 = vmatprep.subr.bf16.mxu0 0
    %235 = vmatpush1.bf16.msra.mxu0 0
    %236 = vmatprep.subr.bf16.mxu0 0
    %237 = vmatpush1.bf16.msra.mxu0 0
    %238 = vmatprep.subr.bf16.mxu0 0
    %239 = vmatpush1.bf16.msra.mxu0 0
    %240 = vmatprep.subr.bf16.mxu0 0
    %241 = vmatpush1.bf16.msra.mxu0 0
    %242 = vmatprep.subr.bf16.mxu0 0
    %243 = vmatpush1.bf16.msra.mxu0 0
    %244 = vmatprep.subr.bf16.mxu0 0
    %245 = vmatpush1.bf16.msra.mxu0 0
    %246 = vmatprep.subr.bf16.mxu0 0
    %247 = vmatpush1.bf16.msra.mxu0 0
    %248 = vmatprep.subr.bf16.mxu0 0
    %249 = vmatpush1.bf16.msra.mxu0 0
    %250 = vmatprep.subr.bf16.mxu0 0
    %251 = vmatpush1.bf16.msra.mxu0 0
    %252 = vmatprep.subr.bf16.mxu0 0
    %253 = vmatpush1.bf16.msra.mxu0 0
    %254 = vmatprep.mubr.bf16.mxu0 0
    %255 = vmatmul.mubr.bf16.gmra.mrb[0].mxu0 %v192
    %v256 = vpop.f32.mrb[0].mxu0
    %v257 = vadd.f32 %v73, %v256
    %v258 = vpop.f32.mrb[0].mxu0
    %v259 = vpop.f32.mrb[0].mxu0
    %v260 = vadd.f32 %v78, %v259
    %v261 = vpop.f32.mrb[0].mxu0
    %262 = vmatprep.mubr.bf16.mxu0 0
    %263 = vmatmul.mubr.bf16.gmra.mrb[0].mxu0 %v195
    %v264 = vpop.f32.mrb[0].mxu0
    %v265 = vadd.f32 %v83, %v264
    %v266 = vpop.f32.mrb[0].mxu0
    %v267 = vpop.f32.mrb[0].mxu0
    %v268 = vadd.f32 %v88, %v267
    %v269 = vpop.f32.mrb[0].mxu0
    %270 = vmatprep.mubr.bf16.mxu0 0
    %271 = vmatmul.mubr.bf16.gmra.mrb[0].mxu0 %v198
    %v272 = vpop.f32.mrb[0].mxu0
    %v273 = vadd.f32 %v93, %v272
    %v274 = vpop.f32.mrb[0].mxu0
    %v275 = vpop.f32.mrb[0].mxu0
    %v276 = vadd.f32 %v98, %v275
    %v277 = vpop.f32.mrb[0].mxu0
    %278 = vmatprep.mubr.bf16.mxu0 0
    %279 = vmatmul.mubr.bf16.gmra.mrb[0].mxu0 %v201
    %v280 = vpop.f32.mrb[0].mxu0
    %v281 = vadd.f32 %v103, %v280
    %v282 = vpop.f32.mrb[0].mxu0
    %v283 = vpop.f32.mrb[0].mxu0
    %v284 = vadd.f32 %v108, %v283
    %v285 = vpop.f32.mrb[0].mxu0
    %286 = vmatprep.mubr.bf16.mxu0 0
    %287 = vmatmul.mubr.bf16.gmra.mrb[0].mxu0 %v204
    %v288 = vpop.f32.mrb[0].mxu0
    %v289 = vadd.f32 %v113, %v288
    %v290 = vpop.f32.mrb[0].mxu0
    %v291 = vpop.f32.mrb[0].mxu0
    %v292 = vadd.f32 %v118, %v291
    %v293 = vpop.f32.mrb[0].mxu0
    %294 = vmatprep.mubr.bf16.mxu0 0
    %295 = vmatmul.mubr.bf16.gmra.mrb[0].mxu0 %v207
    %v296 = vpop.f32.mrb[0].mxu0
    %v297 = vadd.f32 %v123, %v296
    %v298 = vpop.f32.mrb[0].mxu0
    %v299 = vpop.f32.mrb[0].mxu0
    %v300 = vadd.f32 %v128, %v299
    %v301 = vpop.f32.mrb[0].mxu0
    %302 = vmatprep.mubr.bf16.mxu0 0
    %303 = vmatmul.mubr.bf16.gmra.mrb[0].mxu0 %v210
    %v304 = vpop.f32.mrb[0].mxu0
    %v305 = vadd.f32 %v133, %v304
    %v306 = vpop.f32.mrb[0].mxu0
    %v307 = vpop.f32.mrb[0].mxu0
    %v308 = vadd.f32 %v138, %v307
    %v309 = vpop.f32.mrb[0].mxu0
    %310 = vmatprep.mubr.bf16.mxu0 0
    %311 = vmatmul.mubr.bf16.gmra.mrb[0].mxu0 %v213
    %v312 = vpop.f32.mrb[0].mxu0
    %v313 = vadd.f32 %v143, %v312
    %v314 = vpop.f32.mrb[0].mxu0
    %v315 = vpop.f32.mrb[0].mxu0
    %v316 = vadd.f32 %v148, %v315
    %v317 = vpop.f32.mrb[0].mxu0
    %318 = vdwg.mxu0
    %v319 = vmax.f32 %v257, 0.0
    %v320 = vmax.f32 %v260, 0.0
    %v321 = vmax.f32 %v265, 0.0
    %v322 = vmax.f32 %v268, 0.0
    %v323 = vmax.f32 %v273, 0.0
    %v324 = vmax.f32 %v276, 0.0
    %v325 = vmax.f32 %v281, 0.0
    %v326 = vmax.f32 %v284, 0.0
    %v327 = vmax.f32 %v289, 0.0
    %v328 = vmax.f32 %v292, 0.0
    %v329 = vmax.f32 %v297, 0.0
    %v330 = vmax.f32 %v300, 0.0
    %v331 = vmax.f32 %v305, 0.0
    %v332 = vmax.f32 %v308, 0.0
    %v333 = vmax.f32 %v313, 0.0
    %v334 = vmax.f32 %v316, 0.0
    %v335 = vld [vmem:[%s3] sm:$0xf]
    %v336 = vld [vmem:[%s3 + $0x4] sm:$0xf]
    %v337 = vld [vmem:[%s3 + $0x8] sm:$0xf]
    %v338 = vld [vmem:[%s3 + $0xc] sm:$0xf]
    %v339 = vld [vmem:[%s3 + $0x10] sm:$0xf]
    %v340 = vld [vmem:[%s3 + $0x14] sm:$0xf]
    %v341 = vld [vmem:[%s3 + $0x18] sm:$0xf]
    %v342 = vld [vmem:[%s3 + $0x1c] sm:$0xf]
    %v343 = vpack.c.bf16 %v320, %v319
    %v344 = vpack.c.bf16 %v322, %v321
    %v345 = vpack.c.bf16 %v324, %v323
    %v346 = vpack.c.bf16 %v326, %v325
    %v347 = vpack.c.bf16 %v328, %v327
    %v348 = vpack.c.bf16 %v330, %v329
    %v349 = vpack.c.bf16 %v332, %v331
    %v350 = vpack.c.bf16 %v334, %v333
    %v351 = vld [vmem:[%s4] sm:$0xff]
    %v352 = vld [vmem:[%s4 + $0x8] sm:$0xff]
    %v353 = vld [vmem:[%s4 + $0x10] sm:$0xff]
    %v354 = vld [vmem:[%s4 + $0x18] sm:$0xff]
    %v355 = vld [vmem:[%s4 + $0x20] sm:$0xff]
    %v356 = vld [vmem:[%s4 + $0x28] sm:$0xff]
    %v357 = vld [vmem:[%s4 + $0x30] sm:$0xff]
    %v358 = vld [vmem:[%s4 + $0x38] sm:$0xff]
    %360 = vset.pattern.permute.xlu0 0
    %361 = vperm.xlu0 %360, %v351
    %v362 = vpop.permute.xlu0 %361
    %365 = vset.pattern.permute.xlu0 0
    %366 = vperm.xlu0 %365, %v352
    %v367 = vpop.permute.xlu0 %366
    %370 = vset.pattern.permute.xlu0 0
    %371 = vperm.xlu0 %370, %v353
    %v372 = vpop.permute.xlu0 %371
    %375 = vset.pattern.permute.xlu0 0
    %376 = vperm.xlu0 %375, %v354
    %v377 = vpop.permute.xlu0 %376
    %380 = vset.pattern.permute.xlu0 0
    %381 = vperm.xlu0 %380, %v355
    %v382 = vpop.permute.xlu0 %381
    %385 = vset.pattern.permute.xlu0 0
    %386 = vperm.xlu0 %385, %v356
    %v387 = vpop.permute.xlu0 %386
    %390 = vset.pattern.permute.xlu0 0
    %391 = vperm.xlu0 %390, %v357
    %v392 = vpop.permute.xlu0 %391
    %395 = vset.pattern.permute.xlu0 0
    %396 = vperm.xlu0 %395, %v358
    %v397 = vpop.permute.xlu0 %396
    %v407 = vunpack.c.l.b16 %v335
    %v408 = vunpack.c.l.b16 %v336
    %v409 = vunpack.c.l.b16 %v337
    %v410 = vunpack.c.l.b16 %v338
    %v411 = vunpack.c.l.b16 %v339
    %v412 = vunpack.c.l.b16 %v340
    %v413 = vunpack.c.l.b16 %v341
    %v414 = vunpack.c.l.b16 %v342
    %v415 = vpack.c.b16 %v408, %v407
    %v416 = vpack.c.b16 %v410, %v409
    %v417 = vpack.c.b16 %v412, %v411
    %v418 = vpack.c.b16 %v414, %v413
    %423 = vmatprep.subr.bf16.mxu0 0
    %424 = vmatpush1.bf16.msra.mxu0 %v343
    %425 = vmatprep.subr.bf16.mxu0 0
    %426 = vmatpush1.bf16.msra.mxu0 %v344
    %427 = vmatprep.subr.bf16.mxu0 0
    %428 = vmatpush1.bf16.msra.mxu0 %v345
    %429 = vmatprep.subr.bf16.mxu0 0
    %430 = vmatpush1.bf16.msra.mxu0 %v346
    %431 = vmatprep.subr.bf16.mxu0 0
    %432 = vmatpush1.bf16.msra.mxu0 %v347
    %433 = vmatprep.subr.bf16.mxu0 0
    %434 = vmatpush1.bf16.msra.mxu0 %v348
    %435 = vmatprep.subr.bf16.mxu0 0
    %436 = vmatpush1.bf16.msra.mxu0 %v349
    %437 = vmatprep.subr.bf16.mxu0 0
    %438 = vmatpush1.bf16.msra.mxu0 %v350
    %439 = vmatprep.subr.bf16.mxu0 0
    %440 = vmatpush1.bf16.msra.mxu0 0
    %441 = vmatprep.subr.bf16.mxu0 0
    %442 = vmatpush1.bf16.msra.mxu0 0
    %443 = vmatprep.subr.bf16.mxu0 0
    %444 = vmatpush1.bf16.msra.mxu0 0
    %445 = vmatprep.subr.bf16.mxu0 0
    %446 = vmatpush1.bf16.msra.mxu0 0
    %447 = vmatprep.subr.bf16.mxu0 0
    %448 = vmatpush1.bf16.msra.mxu0 0
    %449 = vmatprep.subr.bf16.mxu0 0
    %450 = vmatpush1.bf16.msra.mxu0 0
    %451 = vmatprep.subr.bf16.mxu0 0
    %452 = vmatpush1.bf16.msra.mxu0 0
    %453 = vmatprep.subr.bf16.mxu0 0
    %454 = vmatpush1.bf16.msra.mxu0 0
    %455 = vmatprep.mubr.bf16.mxu0 0
    %456 = vmatmul.mubr.bf16.gmra.mrb[0].mxu0 %v415
    %v457 = vpop.f32.mrb[0].mxu0
    %v458 = vadd.f32 %v362, %v457
    %v459 = vpop.f32.mrb[0].mxu0
    %v460 = vpop.f32.mrb[0].mxu0
    %v461 = vadd.f32 %v367, %v460
    %v462 = vpop.f32.mrb[0].mxu0
    %463 = vmatprep.mubr.bf16.mxu0 0
    %464 = vmatmul.mubr.bf16.gmra.mrb[0].mxu0 %v416
    %v465 = vpop.f32.mrb[0].mxu0
    %v466 = vadd.f32 %v372, %v465
    %v467 = vpop.f32.mrb[0].mxu0
    %v468 = vpop.f32.mrb[0].mxu0
    %v469 = vadd.f32 %v377, %v468
    %v470 = vpop.f32.mrb[0].mxu0
    %471 = vmatprep.mubr.bf16.mxu0 0
    %472 = vmatmul.mubr.bf16.gmra.mrb[0].mxu0 %v417
    %v473 = vpop.f32.mrb[0].mxu0
    %v474 = vadd.f32 %v382, %v473
    %v475 = vpop.f32.mrb[0].mxu0
    %v476 = vpop.f32.mrb[0].mxu0
    %v477 = vadd.f32 %v387, %v476
    %v478 = vpop.f32.mrb[0].mxu0
    %479 = vmatprep.mubr.bf16.mxu0 0
    %480 = vmatmul.mubr.bf16.gmra.mrb[0].mxu0 %v418
    %v481 = vpop.f32.mrb[0].mxu0
    %v482 = vadd.f32 %v392, %v481
    %v483 = vpop.f32.mrb[0].mxu0
    %v484 = vpop.f32.mrb[0].mxu0
    %v485 = vadd.f32 %v397, %v484
    %v486 = vpop.f32.mrb[0].mxu0
    %487 = vdwg.mxu0
    %v488 = vtanh.pop %v458
    %v489 = vtanh.pop %v461
    %v490 = vtanh.pop %v466
    %v491 = vtanh.pop %v469
    %v492 = vtanh.pop %v474
    %v493 = vtanh.pop %v477
    %v494 = vtanh.pop %v482
    %v495 = vtanh.pop %v485
    %v496 = vld [vmem:[%s5] sm:$0xf]
    %v497 = vld [vmem:[%s5 + $0x4] sm:$0xf]
    %v498 = vld [vmem:[%s5 + $0x8] sm:$0xf]
    %v499 = vld [vmem:[%s5 + $0xc] sm:$0xf]
    %v500 = vpack.c.bf16 %v489, %v488
    %v501 = vpack.c.bf16 %v491, %v490
    %v502 = vpack.c.bf16 %v493, %v492
    %v503 = vpack.c.bf16 %v495, %v494
    %v504 = vld [vmem:[%s6] sm:$0xff]
    %v505 = vld [vmem:[%s6 + $0x8] sm:$0xff]
    %v506 = vld [vmem:[%s6 + $0x10] sm:$0xff]
    %v507 = vld [vmem:[%s6 + $0x18] sm:$0xff]
    %509 = vset.pattern.permute.xlu0 0
    %510 = vperm.xlu0 %509, %v504
    %v511 = vpop.permute.xlu0 %510
    %514 = vset.pattern.permute.xlu0 0
    %515 = vperm.xlu0 %514, %v505
    %v516 = vpop.permute.xlu0 %515
    %519 = vset.pattern.permute.xlu0 0
    %520 = vperm.xlu0 %519, %v506
    %v521 = vpop.permute.xlu0 %520
    %524 = vset.pattern.permute.xlu0 0
    %525 = vperm.xlu0 %524, %v507
    %v526 = vpop.permute.xlu0 %525
    %v532 = vunpack.c.l.b16 %v496
    %v533 = vunpack.c.l.b16 %v497
    %v534 = vunpack.c.l.b16 %v498
    %v535 = vunpack.c.l.b16 %v499
    %v536 = vpack.c.b16 %v533, %v532
    %v537 = vpack.c.b16 %v535, %v534
    %vm538 = vcmask 523264
    %v540 = vsel %vm538, %v536, 0
    %v543 = vsel %vm538, %v537, 0
    %545 = vmatprep.subr.bf16.mxu0 0
    %546 = vmatpush1.bf16.msra.mxu0 %v500
    %547 = vmatprep.subr.bf16.mxu0 0
    %548 = vmatpush1.bf16.msra.mxu0 %v501
    %549 = vmatprep.subr.bf16.mxu0 0
    %550 = vmatpush1.bf16.msra.mxu0 %v502
    %551 = vmatprep.subr.bf16.mxu0 0
    %552 = vmatpush1.bf16.msra.mxu0 %v503
    %553 = vmatprep.subr.bf16.mxu0 0
    %554 = vmatpush1.bf16.msra.mxu0 0
    %555 = vmatprep.subr.bf16.mxu0 0
    %556 = vmatpush1.bf16.msra.mxu0 0
    %557 = vmatprep.subr.bf16.mxu0 0
    %558 = vmatpush1.bf16.msra.mxu0 0
    %559 = vmatprep.subr.bf16.mxu0 0
    %560 = vmatpush1.bf16.msra.mxu0 0
    %561 = vmatprep.subr.bf16.mxu0 0
    %562 = vmatpush1.bf16.msra.mxu0 0
    %563 = vmatprep.subr.bf16.mxu0 0
    %564 = vmatpush1.bf16.msra.mxu0 0
    %565 = vmatprep.subr.bf16.mxu0 0
    %566 = vmatpush1.bf16.msra.mxu0 0
    %567 = vmatprep.subr.bf16.mxu0 0
    %568 = vmatpush1.bf16.msra.mxu0 0
    %569 = vmatprep.subr.bf16.mxu0 0
    %570 = vmatpush1.bf16.msra.mxu0 0
    %571 = vmatprep.subr.bf16.mxu0 0
    %572 = vmatpush1.bf16.msra.mxu0 0
    %573 = vmatprep.subr.bf16.mxu0 0
    %574 = vmatpush1.bf16.msra.mxu0 0
    %575 = vmatprep.subr.bf16.mxu0 0
    %576 = vmatpush1.bf16.msra.mxu0 0
    %577 = vmatprep.mubr.bf16.mxu0 0
    %578 = vmatmul.mubr.bf16.gmra.mrb[0].mxu0 %v540
    %v579 = vpop.f32.mrb[0].mxu0
    %v580 = vadd.f32 %v511, %v579
    %v581 = vpop.f32.mrb[0].mxu0
    %v582 = vpop.f32.mrb[0].mxu0
    %v583 = vadd.f32 %v516, %v582
    %v584 = vpop.f32.mrb[0].mxu0
    %585 = vmatprep.mubr.bf16.mxu0 0
    %586 = vmatmul.mubr.bf16.gmra.mrb[0].mxu0 %v543
    %v587 = vpop.f32.mrb[0].mxu0
    %v588 = vadd.f32 %v521, %v587
    %v589 = vpop.f32.mrb[0].mxu0
    %v590 = vpop.f32.mrb[0].mxu0
    %v591 = vadd.f32 %v526, %v590
    %v592 = vpop.f32.mrb[0].mxu0
    %593 = vdwg.mxu0
    %v594 = vtanh.pop %v580
    %v595 = vtanh.pop %v583
    %v596 = vtanh.pop %v588
    %v597 = vtanh.pop %v591
    %v598 = vld [vmem:[%s7] sm:$0xff]
    %v599 = vld [vmem:[%s7 + $0x8] sm:$0xff]
    %v600 = vld [vmem:[%s7 + $0x10] sm:$0xff]
    %v601 = vld [vmem:[%s7 + $0x18] sm:$0xff]
    %603 = vset.pattern.permute.xlu0 0
    %604 = vperm.xlu0 %603, %v598
    %v605 = vpop.permute.xlu0 %604
    %608 = vset.pattern.permute.xlu0 0
    %609 = vperm.xlu0 %608, %v599
    %v610 = vpop.permute.xlu0 %609
    %613 = vset.pattern.permute.xlu0 0
    %614 = vperm.xlu0 %613, %v600
    %v615 = vpop.permute.xlu0 %614
    %618 = vset.pattern.permute.xlu0 0
    %619 = vperm.xlu0 %618, %v601
    %v620 = vpop.permute.xlu0 %619
    %v622 = vmul.f32 %v605, %v594
    %v623 = vmul.f32 %v610, %v595
    %v624 = vmul.f32 %v615, %v596
    %v625 = vmul.f32 %v620, %v597
    %v626 = vadd.f32 %v622, %v623
    %v627 = vadd.f32 %v626, %v624
    %v628 = vadd.f32 %v627, %v625
    %v629 = vrot.slane %v628, 4
    %v630 = vadd.f32 %v628, %v629
    %v631 = vrot.slane %v630, 2
    %v632 = vadd.f32 %v630, %v631
    %v633 = vrot.slane %v632, 1
    %v634 = vadd.f32 %v632, %v633
    %v635 = vld [vmem:[#allocation2] sm:$0x1]
    %637 = vset.pattern.permute.xlu0 0
    %638 = vperm.xlu0 %637, %v635
    %v639 = vpop.permute.xlu0 %638
    %v641 = vlaneseq
    %v642 = vshrl.u32 %v641, 7
    %v643 = vsub.s32 0, %v642
    %v644 = vrot.slane %v639, %v643
    %v645 = vadd.f32 %v634, %v644
    %646 = vst [vmem:[#allocation3] sm:$0x1] %v645
    // Predicated region
    $region38: #{tpu_custom_call.1} parent=1 // pred_check
      _
    $region39: #{tpu_custom_call.1} parent=1 // pred_check_branch
      %648 = sbr.rel (0) target = $region41
    $region40: #{tpu_custom_call.1} parent=1 // pred_region
      %s650 = ssub.s32 16, 16
      %651 = vsyncadd [#allocation4], %s650
      %s653 = sshll.u32 [#allocation3], 4
      %s654 = int_to_ptr.vmem [resolvable:$true] %s653
      %656 = dma.vmem_to_hbm [thread:$0]  %s654, 16, %s9, [#allocation4]
    $region41: #{tpu_custom_call.1} parent=1 // pred_fallthru
      _
    // Predicated region
    $region42: #{tpu_custom_call.1} parent=1 // pred_check
      _
    $region43: #{tpu_custom_call.1} parent=1 // pred_check_branch
      %658 = sbr.rel (0) target = $region45
    $region44: #{tpu_custom_call.1} parent=1 // pred_region
      %659 = dma.done [#allocation4], 16
    $region45: #{tpu_custom_call.1} parent=1 // pred_fallthru
      _
    %660 = vsyncpa [#allocation4], 1

</llo_original>
